<compile_context>
chip_gen: v5e
topology: v5e:2x2
jax: 0.10.0
libtpu: 0.0.40
codegen_flags: <defaults>
</compile_context>

<pallas_src>
import numpy as np
import jax
import jax.numpy as jnp
from jax import lax
from jax.experimental import pallas as pl
from jax.experimental.pallas import tpu as pltpu


# ---------------- anchor helpers (plain numpy, deterministic) ----------------
def generate_anchor(base_size=16, ratios=(0.5, 1.0, 2.0), scales=(8, 16, 32)):
    y = base_size / 2.0
    x = base_size / 2.0
    anchors = np.zeros((len(ratios) * len(scales), 4), dtype=np.float32)
    for i in range(len(ratios)):
        for j in range(len(scales)):
            h = base_size * np.sqrt(ratios[i]) * scales[j]
            w = base_size * np.sqrt(1.0 / ratios[i]) * scales[j]
            idx = i * len(scales) + j
            anchors[idx, 0] = y - h / 2
            anchors[idx, 1] = x - w / 2
            anchors[idx, 2] = y + h / 2
            anchors[idx, 3] = x + w / 2
    return anchors


def shift_anchor(anchor, feat_stride, height, width):
    shift_y = np.arange(0, feat_stride * height, feat_stride)
    shift_x = np.arange(0, feat_stride * width, feat_stride)
    shift_x, shift_y = np.meshgrid(shift_x, shift_y)
    shift = np.stack((shift_y.ravel(), shift_x.ravel(),
                      shift_y.ravel(), shift_x.ravel()), axis=1)
    A = anchor.shape[0]
    K = shift.shape[0]
    anchor = anchor.reshape((1, A, 4)) + shift.reshape((1, K, 4)).transpose((1, 0, 2))
    return anchor.reshape((K * A, 4)).astype(np.float32)


def _round_up(x, m):
    return (x + m - 1) // m * m


# ------------------------------- Pallas kernel --------------------------------
def _make_rpn_kernel(rows_out, Wr, Cin, Cmid, NOUT, A):
    fg_lo = 6 * A     # fused-head column layout: [4A loc | 2A score | A fg | pad]
    fg_hi = 7 * A

    def kernel(xc_ref, w1_ref, b1_ref, wh_ref, bh_ref, out_ref):
        # xc_ref : ((tile_h+2)*Wr, 3*Cin) bf16  row-tile (with 2 halo rows) of the
        #                                       column-shift-concatenated input.
        # w1_ref : (3, 3*Cin, Cmid)       bf16  conv1 taps grouped by kh.
        # b1_ref : (1, Cmid)              f32
        # wh_ref : (Cmid, NOUT)           bf16  [w_loc | w_score | w_fg - w_bg | 0]
        # bh_ref : (1, NOUT)              f32
        # out_ref: (tile_h*Wr, NOUT)      f32   lane-dense fused head output.

        # 3x3 conv == 3 accumulated matmuls with K = 3*Cin.  kh shifts are
        # sublane-aligned slices (offsets are multiples of Wr, Wr % 8 == 0).
        acc = jnp.dot(xc_ref[0:rows_out, :], w1_ref[0],
                      preferred_element_type=jnp.float32)
        acc += jnp.dot(xc_ref[Wr:Wr + rows_out, :], w1_ref[1],
                       preferred_element_type=jnp.float32)
        acc += jnp.dot(xc_ref[2 * Wr:2 * Wr + rows_out, :], w1_ref[2],
                       preferred_element_type=jnp.float32)
        inter = jnp.maximum(acc + b1_ref[...], 0.0)           # (rows_out, Cmid) f32

        # Fused loc/score/fg head: one lane-dense (NOUT multiple of 128) matmul.
        head = jnp.dot(inter.astype(jnp.bfloat16), wh_ref[...],
                       preferred_element_type=jnp.float32) + bh_ref[...]

        # fg columns get sigmoid(s_fg - s_bg) == softmax over each (bg, fg) pair.
        col = lax.broadcasted_iota(jnp.int32, head.shape, 1)
        sig = pl.reciprocal(1.0 + jnp.exp(-head), approx=True)
        out_ref[...] = jnp.where((col >= fg_lo) & (col < fg_hi), sig, head)

    return kernel


def rpn_pallas(params, x_nchw, tile_h=None):
    """conv1+ReLU, loc conv, score conv and fg softmax in one Pallas kernel."""
    N, Cin, H, W = x_nchw.shape
    Cmid = params["w1"].shape[-1]
    A = params["w_score"].shape[-1] // 2
    NOUT = _round_up(7 * A, 128)          # [4A loc | 2A score | A fg-logit | pad]

    # ---- activation prep (plain JAX, bf16): column (kw) shifts only ----------
    x = jnp.transpose(x_nchw, (0, 2, 3, 1)).astype(jnp.bfloat16)   # NHWC
    xp = jnp.pad(x, ((0, 0), (1, 1), (1, 1), (0, 0)))              # (N,H+2,W+2,Cin)
    # channel index in xc = kw*Cin + cin
    xc = jnp.concatenate([xp[:, :, kw:kw + W, :] for kw in range(3)], axis=-1)
    Wr = _round_up(W, 8)                  # keep in-kernel row shifts sublane-aligned
    if Wr != W:
        xc = jnp.pad(xc, ((0, 0), (0, 0), (0, Wr - W), (0, 0)))

    if tile_h is None:
        tile_h = max(1, min(H, 512 // Wr))    # ~<=512 output rows per grid step
    Ht = _round_up(H, tile_h)
    if Ht != H:                               # bottom-pad so tiles divide evenly
        xc = jnp.pad(xc, ((0, 0), (0, Ht - H), (0, 0), (0, 0)))
    n_tiles = Ht // tile_h
    rows_in = (tile_h + 2) * Wr
    rows_out = tile_h * Wr

    # per-tile slabs with their own 2-row halo (keeps BlockSpec blocks disjoint)
    xt = jnp.stack([xc[:, t * tile_h:t * tile_h + tile_h + 2]
                    for t in range(n_tiles)], axis=1)
    xt = xt.reshape(N, n_tiles, rows_in, 3 * Cin)

    # ---- weight prep (bf16 matmul streams, f32 biases) ------------------------
    # row index of w1 = kw*Cin + cin, matching the xc channel concat order.
    w1 = params["w1"].reshape(3, 3 * Cin, Cmid).astype(jnp.bfloat16)
    b1 = params["b1"].astype(jnp.float32)                           # (1, Cmid)

    wl, bl = params["w_loc"], params["b_loc"]
    ws, bs = params["w_score"], params["b_score"]
    w_fg = ws[:, 1::2] - ws[:, 0::2]           # fg - bg columns -> sigmoid == softmax
    b_fg = bs[:, 1::2] - bs[:, 0::2]
    wh = jnp.concatenate(
        [wl, ws, w_fg, jnp.zeros((Cmid, NOUT - 7 * A), jnp.float32)], axis=1)
    bh = jnp.concatenate(
        [bl, bs, b_fg, jnp.zeros((1, NOUT - 7 * A), jnp.float32)], axis=1)
    wh = wh.astype(jnp.bfloat16)
    bh = bh.astype(jnp.float32)

    kernel = _make_rpn_kernel(rows_out, Wr, Cin, Cmid, NOUT, A)

    # NOTE: weight/bias operands have constant index maps so Pallas only DMAs
    # them once across the grid; at real RPN sizes they could additionally be
    # single-buffered via pipeline_mode=pl.Buffered(1) to reclaim VMEM.
    def const(shape):
        return pl.BlockSpec(shape, lambda n, t, _s=shape: (0,) * len(_s))

    out = pl.pallas_call(
        kernel,
        grid=(N, n_tiles),
        in_specs=[
            pl.BlockSpec((None, None, rows_in, 3 * Cin), lambda n, t: (n, t, 0, 0)),
            const((3, 3 * Cin, Cmid)),
            const((1, Cmid)),
            const((Cmid, NOUT)),
            const((1, NOUT)),
        ],
        out_specs=pl.BlockSpec((None, None, rows_out, NOUT),
                               lambda n, t: (n, t, 0, 0)),
        out_shape=jax.ShapeDtypeStruct((N, n_tiles, rows_out, NOUT), jnp.float32),
        compiler_params=pltpu.CompilerParams(
            dimension_semantics=("parallel", "parallel"),
            vmem_limit_bytes=64 * 1024 * 1024),
    )(xt, w1, b1, wh, bh)

    # (N, n_tiles, tile_h*Wr, NOUT) -> (N, Ht, Wr, NOUT) -> crop padding rows/cols
    out = out.reshape(N, Ht, Wr, NOUT)[:, :H, :W, :]
    loc = out[..., 0:4 * A].reshape(N, H * W, 4 * A)
    score = out[..., 4 * A:6 * A].reshape(N, H * W, 2 * A)
    fg = out[..., 6 * A:7 * A].reshape(N, H * W, A)
    return loc, score, fg


# ------------------------------ forward wrapper --------------------------------
def rpn_forward(params, x_nchw, img_size, scale=1.0, feat_size=16):
    n, _, hh, ww = x_nchw.shape
    anchor = shift_anchor(params["anchors"], feat_size, hh, ww)

    loc, score, fg = rpn_pallas(params, x_nchw)

    # Kernel outputs are already channels-last, so PyTorch's
    # permute(0,2,3,1).contiguous().view(...) is just a reshape here.
    rpn_loc = loc.reshape(n, -1, 4)
    rpn_score = score.reshape(n, -1, 2)
    rpn_fg_score = fg.reshape(n, -1)

    # TODO(synk): ProposalCreator (loc2box, clipping, top-k sort, NMS) has
    # data-dependent dynamic output shapes and depends on helpers (`loc2box`,
    # `nms`) undefined in the reference; not reproduced here.
    rois = np.zeros((0, 4), dtype=np.float32)
    roi_indices = [np.zeros((0,), dtype=np.int32) for _ in range(n)]
    del rpn_fg_score  # only consumed by the (skipped) proposal layer
    return rpn_loc, rpn_score, rois, roi_indices, anchor


# ------------------------------ pure-JAX reference -----------------------------
def rpn_reference(params, x_nchw):
    x = jnp.transpose(x_nchw, (0, 2, 3, 1)).astype(jnp.float32)
    inter = lax.conv_general_dilated(
        x, params["w1"], window_strides=(1, 1), padding="SAME",
        dimension_numbers=("NHWC", "HWIO", "NHWC"))
    inter = jnp.maximum(inter + params["b1"], 0.0)
    N, H, W, Cmid = inter.shape
    f = inter.reshape(N, H * W, Cmid)
    loc = f @ params["w_loc"] + params["b_loc"]
    score = f @ params["w_score"] + params["b_score"]
    A = params["w_score"].shape[-1] // 2
    fg = jax.nn.softmax(score.reshape(N, H * W, A, 2), axis=-1)[..., 1]
    return loc, score, fg


# ------------------------------------ main --------------------------------------
if __name__ == "__main__":
    N, Cin, Cmid, H, W = 2, 16, 32, 8, 8
    feat_size = 16
    A = 9  # 3 ratios x 3 scales

    key = jax.random.PRNGKey(0)
    k = jax.random.split(key, 7)
    params = {
        "anchors": generate_anchor(feat_size),
        "w1": jax.random.normal(k[0], (3, 3, Cin, Cmid), jnp.float32) * 0.05,
        "b1": jax.random.normal(k[1], (1, Cmid), jnp.float32) * 0.05,
        "w_loc": jax.random.normal(k[2], (Cmid, 4 * A), jnp.float32) * 0.05,
        "b_loc": jax.random.normal(k[3], (1, 4 * A), jnp.float32) * 0.05,
        "w_score": jax.random.normal(k[4], (Cmid, 2 * A), jnp.float32) * 0.05,
        "b_score": jax.random.normal(k[5], (1, 2 * A), jnp.float32) * 0.05,
    }
    x = jax.random.normal(k[6], (N, Cin, H, W), jnp.float32)
    img_size = (feat_size * H, feat_size * W)

    rpn_loc, rpn_score, rois, roi_indices, anchor = rpn_forward(
        params, x, img_size, scale=1.0, feat_size=feat_size)
    jax.block_until_ready((rpn_loc, rpn_score))

    # sanity checks against a pure-JAX reference (single-tile and multi-tile paths)
    loc_r, score_r, fg_r = rpn_reference(params, x)
    for th in (None, 4):
        loc_p, score_p, fg_p = rpn_pallas(params, x, tile_h=th)
        jax.block_until_ready((loc_p, score_p, fg_p))
        np.testing.assert_allclose(np.asarray(loc_p), np.asarray(loc_r),
                                   rtol=2e-2, atol=2e-2)
        np.testing.assert_allclose(np.asarray(score_p), np.asarray(score_r),
                                   rtol=2e-2, atol=2e-2)
        np.testing.assert_allclose(np.asarray(fg_p), np.asarray(fg_r),
                                   rtol=2e-2, atol=2e-2)

    assert rpn_loc.shape == (N, H * W * A, 4)
    assert rpn_score.shape == (N, H * W * A, 2)
    assert anchor.shape == (H * W * A, 4)

    print("KERNEL_OK")
</pallas_src>

<mosaic_0001>
module attributes {stable_mosaic.version = 11 : i64} {
  func.func @kernel(%arg0: i32, %arg1: i32, %arg2: memref<1x1x80x48xbf16, #tpu.memory_space<vmem>>, %arg3: memref<3x48x32xbf16, #tpu.memory_space<vmem>>, %arg4: memref<1x32xf32, #tpu.memory_space<vmem>>, %arg5: memref<32x128xbf16, #tpu.memory_space<vmem>>, %arg6: memref<1x128xf32, #tpu.memory_space<vmem>>, %arg7: memref<1x1x64x128xf32, #tpu.memory_space<vmem>>) attributes {dimension_semantics = [#tpu.dimension_semantics<parallel>, #tpu.dimension_semantics<parallel>], iteration_bounds = array<i64: 2, 1>, scalar_prefetch = 0 : i64, scratch_operands = 0 : i64, tpu.core_type = #tpu.core_type<tc>, window_params = [{transform_indices = @transform_0, window_bounds = array<i64: 1, 1, 80, 48>}, {pipeline_mode = #tpu.pipeline_mode<synchronous>, transform_indices = @transform_1, window_bounds = array<i64: 3, 48, 32>}, {pipeline_mode = #tpu.pipeline_mode<synchronous>, transform_indices = @transform_2, window_bounds = array<i64: 1, 32>}, {pipeline_mode = #tpu.pipeline_mode<synchronous>, transform_indices = @transform_3, window_bounds = array<i64: 32, 128>}, {pipeline_mode = #tpu.pipeline_mode<synchronous>, transform_indices = @transform_4, window_bounds = array<i64: 1, 128>}, {transform_indices = @transform_5, window_bounds = array<i64: 1, 1, 64, 128>}]} {
    %c0 = arith.constant 0 : index
    %c0_0 = arith.constant 0 : index
    %c0_1 = arith.constant 0 : index
    %c0_2 = arith.constant 0 : index
    %0 = vector.load %arg2[%c0, %c0_0, %c0_1, %c0_2] : memref<1x1x80x48xbf16, #tpu.memory_space<vmem>>, vector<1x1x64x48xbf16>
    %1 = vector.shape_cast %0 : vector<1x1x64x48xbf16> to vector<64x48xbf16>
    %c0_3 = arith.constant 0 : index
    %c0_4 = arith.constant 0 : index
    %c0_5 = arith.constant 0 : index
    %2 = vector.load %arg3[%c0_3, %c0_4, %c0_5] : memref<3x48x32xbf16, #tpu.memory_space<vmem>>, vector<1x48x32xbf16>
    %3 = vector.shape_cast %2 : vector<1x48x32xbf16> to vector<48x32xbf16>
    %cst = arith.constant dense<0.000000e+00> : vector<64x32xf32>
    %4 = tpu.matmul %1, %3, %cst {dimension_numbers = #tpu.dot_dimension_numbers<[1], [0], [0], [1], [0, 0, 1, 1], [], []>} : vector<64x48xbf16>, vector<48x32xbf16>, vector<64x32xf32> -> vector<64x32xf32>
    %c0_6 = arith.constant 0 : index
    %c0_7 = arith.constant 0 : index
    %c8 = arith.constant 8 : index
    %c0_8 = arith.constant 0 : index
    %5 = vector.load %arg2[%c0_6, %c0_7, %c8, %c0_8] : memref<1x1x80x48xbf16, #tpu.memory_space<vmem>>, vector<1x1x64x48xbf16>
    %6 = vector.shape_cast %5 : vector<1x1x64x48xbf16> to vector<64x48xbf16>
    %c1 = arith.constant 1 : index
    %c0_9 = arith.constant 0 : index
    %c0_10 = arith.constant 0 : index
    %7 = vector.load %arg3[%c1, %c0_9, %c0_10] : memref<3x48x32xbf16, #tpu.memory_space<vmem>>, vector<1x48x32xbf16>
    %8 = vector.shape_cast %7 : vector<1x48x32xbf16> to vector<48x32xbf16>
    %cst_11 = arith.constant dense<0.000000e+00> : vector<64x32xf32>
    %9 = tpu.matmul %6, %8, %cst_11 {dimension_numbers = #tpu.dot_dimension_numbers<[1], [0], [0], [1], [0, 0, 1, 1], [], []>} : vector<64x48xbf16>, vector<48x32xbf16>, vector<64x32xf32> -> vector<64x32xf32>
    %10 = arith.addf %4, %9 : vector<64x32xf32>
    %c0_12 = arith.constant 0 : index
    %c0_13 = arith.constant 0 : index
    %c16 = arith.constant 16 : index
    %c0_14 = arith.constant 0 : index
    %11 = vector.load %arg2[%c0_12, %c0_13, %c16, %c0_14] : memref<1x1x80x48xbf16, #tpu.memory_space<vmem>>, vector<1x1x64x48xbf16>
    %12 = vector.shape_cast %11 : vector<1x1x64x48xbf16> to vector<64x48xbf16>
    %c2 = arith.constant 2 : index
    %c0_15 = arith.constant 0 : index
    %c0_16 = arith.constant 0 : index
    %13 = vector.load %arg3[%c2, %c0_15, %c0_16] : memref<3x48x32xbf16, #tpu.memory_space<vmem>>, vector<1x48x32xbf16>
    %14 = vector.shape_cast %13 : vector<1x48x32xbf16> to vector<48x32xbf16>
    %cst_17 = arith.constant dense<0.000000e+00> : vector<64x32xf32>
    %15 = tpu.matmul %12, %14, %cst_17 {dimension_numbers = #tpu.dot_dimension_numbers<[1], [0], [0], [1], [0, 0, 1, 1], [], []>} : vector<64x48xbf16>, vector<48x32xbf16>, vector<64x32xf32> -> vector<64x32xf32>
    %16 = arith.addf %10, %15 : vector<64x32xf32>
    %c0_18 = arith.constant 0 : index
    %c0_19 = arith.constant 0 : index
    %17 = vector.load %arg4[%c0_18, %c0_19] : memref<1x32xf32, #tpu.memory_space<vmem>>, vector<1x32xf32>
    %18 = vector.broadcast %17 : vector<1x32xf32> to vector<64x32xf32>
    %19 = arith.addf %16, %18 : vector<64x32xf32>
    %cst_20 = arith.constant 0.000000e+00 : f32
    %20 = vector.broadcast %cst_20 : f32 to vector<64x32xf32>
    %21 = arith.maximumf %19, %20 : vector<64x32xf32>
    %22 = arith.truncf %21 : vector<64x32xf32> to vector<64x32xbf16>
    %c0_21 = arith.constant 0 : index
    %c0_22 = arith.constant 0 : index
    %23 = vector.load %arg5[%c0_21, %c0_22] : memref<32x128xbf16, #tpu.memory_space<vmem>>, vector<32x128xbf16>
    %cst_23 = arith.constant dense<0.000000e+00> : vector<64x128xf32>
    %24 = tpu.matmul %22, %23, %cst_23 {dimension_numbers = #tpu.dot_dimension_numbers<[1], [0], [0], [1], [0, 0, 1, 1], [], []>} : vector<64x32xbf16>, vector<32x128xbf16>, vector<64x128xf32> -> vector<64x128xf32>
    %c0_24 = arith.constant 0 : index
    %c0_25 = arith.constant 0 : index
    %25 = vector.load %arg6[%c0_24, %c0_25] : memref<1x128xf32, #tpu.memory_space<vmem>>, vector<1x128xf32>
    %26 = vector.broadcast %25 : vector<1x128xf32> to vector<64x128xf32>
    %27 = arith.addf %24, %26 : vector<64x128xf32>
    %28 = tpu.iota {dimensions = array<i32: 1>} : vector<64x128xi32>
    %cst_26 = arith.constant 0.000000e+00 : f32
    %29 = vector.broadcast %cst_26 : f32 to vector<64x128xf32>
    %30 = arith.subf %29, %27 : vector<64x128xf32>
    %31 = math.exp %30 : vector<64x128xf32>
    %cst_27 = arith.constant 1.000000e+00 : f32
    %32 = vector.broadcast %cst_27 : f32 to vector<64x128xf32>
    %33 = arith.addf %32, %31 : vector<64x128xf32>
    %34 = tpu.reciprocal %33 {approx = true} : vector<64x128xf32> -> vector<64x128xf32>
    %c54_i32 = arith.constant 54 : i32
    %35 = vector.broadcast %c54_i32 : i32 to vector<64x128xi32>
    %36 = arith.cmpi sge, %28, %35 : vector<64x128xi32>
    %c63_i32 = arith.constant 63 : i32
    %37 = vector.broadcast %c63_i32 : i32 to vector<64x128xi32>
    %38 = arith.cmpi slt, %28, %37 : vector<64x128xi32>
    %39 = arith.andi %36, %38 : vector<64x128xi1>
    %40 = arith.select %39, %34, %27 : vector<64x128xi1>, vector<64x128xf32>
    %c0_28 = arith.constant 0 : index
    %c0_29 = arith.constant 0 : index
    %c0_30 = arith.constant 0 : index
    %c0_31 = arith.constant 0 : index
    %41 = vector.load %arg7[%c0_28, %c0_29, %c0_30, %c0_31] : memref<1x1x64x128xf32, #tpu.memory_space<vmem>>, vector<1x1x64x128xf32>
    %42 = vector.shape_cast %41 : vector<1x1x64x128xf32> to vector<64x128xf32>
    %43 = vector.shape_cast %40 : vector<64x128xf32> to vector<1x1x64x128xf32>
    tpu.vector_store %arg7[%c0_28, %c0_29, %c0_30, %c0_31], %43 {strides = array<i32>} : memref<1x1x64x128xf32, #tpu.memory_space<vmem>>, vector<1x1x64x128xf32>,
    return
  }
  func.func @transform_0(%arg0: i32, %arg1: i32) -> (i32, i32, i32, i32) {
    %c0_i32 = arith.constant 0 : i32
    %c0_i32_0 = arith.constant 0 : i32
    %c0_i32_1 = arith.constant 0 : i32
    return %arg0, %arg1, %c0_i32, %c0_i32_0 : i32, i32, i32, i32
  }
  func.func @transform_1(%arg0: i32, %arg1: i32) -> (i32, i32, i32) {
    %c0_i32 = arith.constant 0 : i32
    %c0_i32_0 = arith.constant 0 : i32
    %c0_i32_1 = arith.constant 0 : i32
    %c0_i32_2 = arith.constant 0 : i32
    return %c0_i32, %c0_i32_0, %c0_i32_1 : i32, i32, i32
  }
  func.func @transform_2(%arg0: i32, %arg1: i32) -> (i32, i32) {
    %c0_i32 = arith.constant 0 : i32
    %c0_i32_0 = arith.constant 0 : i32
    %c0_i32_1 = arith.constant 0 : i32
    return %c0_i32, %c0_i32_0 : i32, i32
  }
  func.func @transform_3(%arg0: i32, %arg1: i32) -> (i32, i32) {
    %c0_i32 = arith.constant 0 : i32
    %c0_i32_0 = arith.constant 0 : i32
    %c0_i32_1 = arith.constant 0 : i32
    return %c0_i32, %c0_i32_0 : i32, i32
  }
  func.func @transform_4(%arg0: i32, %arg1: i32) -> (i32, i32) {
    %c0_i32 = arith.constant 0 : i32
    %c0_i32_0 = arith.constant 0 : i32
    %c0_i32_1 = arith.constant 0 : i32
    return %c0_i32, %c0_i32_0 : i32, i32
  }
  func.func @transform_5(%arg0: i32, %arg1: i32) -> (i32, i32, i32, i32) {
    %c0_i32 = arith.constant 0 : i32
    %c0_i32_0 = arith.constant 0 : i32
    %c0_i32_1 = arith.constant 0 : i32
    return %arg0, %arg1, %c0_i32, %c0_i32_0 : i32, i32, i32, i32
  }
}

</mosaic_0001>

<llo_original>
// kernel: tpu_custom_call.1
$region0: #{tpu_custom_call.1}
  #allocation0 [shape = 'u32[]', space=smem, size = 0x4, offset = 0x4, fixed_abs, tag = 'smem constant byte address 0x4 - core index']
  #allocation1 [shape = 'u32[72,128]{1,0:T(1,128)}', space=vmem, size = 0x9000, scoped, tag = 'internal scratch']
  %s0 = inlined_call_operand.vmem [shape: bf16[2,1,80,48], index: 0, kind: input, shape index: {}]
  %s1 = inlined_call_operand.vmem [shape: bf16[3,48,32], index: 1, kind: input, shape index: {}]
  %s2 = inlined_call_operand.vmem [shape: f32[1,32], index: 2, kind: input, shape index: {}]
  %s3 = inlined_call_operand.vmem [shape: bf16[32,128], index: 3, kind: input, shape index: {}]
  %s4 = inlined_call_operand.vmem [shape: f32[1,128], index: 4, kind: input, shape index: {}]
  %s5 = inlined_call_operand.hbm [shape: f32[2,1,64,128], index: 5, kind: output, shape index: {}]
  %s6 = sld [smem:[#allocation0]]
  $region53: #{tpu_custom_call.1} parent=0
    _
  %s8 = ssub.s32 1, %s6
  %s9 = scalar_select 0, %s8, %s6
  $region1: #{tpu_custom_call.1} parent=0
    #allocation2 [shape = 'u8[65536]{0}', space=vmem, size = 0x10000, scoped, tag = 'output window, operand 0']
    #allocation3 [shape = 's32[2]{0}', space=sflag, size = 0x8, scoped, tag = 'scoped memory for tpu_custom_call.1']
    %10 = vsyncpa [#allocation3], 0
    %s11 = scalar_lea.sflag [#allocation3], 1
    %12 = vsyncpa %s11, 0
    loop: start=0, step=1, limit=4
    $region2: #{tpu_custom_call.1} parent=1 // loop_pre_header
      _
    $region3: #{tpu_custom_call.1} parent=1 // loop_header
      %s14 = sphi 0, %s18
      %p15 = scmp.ge.s32.totalorder %s14, 4
      %s21 = sphi 0, %s33
      %s22 = sphi 0, %s29
      %s23 = sphi 0, %s21
      %s24 = sphi 0, %s22
      %s25 = sphi 0, %s23
      %s26 = sphi 0, %s24
      %s38 = sphi 0, %s40
      %s41 = sphi 0, %s38
      %s42 = sphi 0, %s41
      %s58 = sphi 0, %s42
      %s62 = sphi 0, %s62
      %s64 = sphi 0, %s62
      %s65 = sphi 0, %s64
      %s79 = sphi 0, %s65
      %s83 = sphi 0, %s83
      %s85 = sphi 0, %s83
      %s86 = sphi 0, %s85
      %s100 = sphi 0, %s86
      %s104 = sphi 0, %s104
      %s106 = sphi 0, %s104
      %s107 = sphi 0, %s106
      %s121 = sphi 0, %s107
      %s125 = sphi 0, %s125
      %s127 = sphi 0, %s125
      %s128 = sphi 0, %s127
      %s142 = sphi 0, %s128
      %s150 = sphi 0, %s152
      %s153 = sphi 0, %s150
      %s154 = sphi 0, %s153
      %s170 = sphi 0, %s154
    $region4: #{tpu_custom_call.1} parent=1 // loop_header_branch
      %17 = sbr.rel (%p15) target = $region8
    $region5: #{tpu_custom_call.1} parent=1 // loop_body
      %s19 = ssub.s32 %s14, 1
      %s20 = ssub.s32 %s14, 2
      %s27 = sadd.s32 1, %s22
      %p28 = scmp.ge.s32.totalorder %s27, 1
      %s29 = scalar_select %p28, 0, %s27
      %s30 = sadd.s32 1, %s21
      %s31 = scalar_select %p28, %s30, %s21
      %p32 = scmp.ge.s32.totalorder %s31, 2
      %s33 = scalar_select %p32, 0, %s31
      %s34 = ssub.s32 %s21, %s33
      %s35 = ssub.s32 %s22, %s29
      %s36 = sor.u32 %s34, %s35
      %p37 = scmp.eq.s32.totalorder %s36, 0
      %s39 = sadd.s32 %s38, 1
      %s40 = scalar_select %p37, %s38, %s39
      %p43 = pneg %p37
      %p44 = scmp.eq.s32.totalorder %s14, 1
      %p45 = por %p43, %p44
      %p46 = scmp.ne.s32.totalorder %s38, %s41
      %p47 = scmp.eq.s32.totalorder %s14, 0
      %p48 = por %p46, %p47
      %p49 = scmp.ne.s32.totalorder %s38, %s41
      %p50 = scmp.eq.s32.totalorder %s19, 1
      %p51 = por %p49, %p50
      %p52 = scmp.ne.s32.totalorder %s41, %s42
      %p53 = scmp.eq.s32.totalorder %s19, 0
      %p54 = por %p52, %p53
      %p55 = scmp.ne.s32.totalorder %s41, %s42
      %p56 = scmp.eq.s32.totalorder %s20, 1
      %p57 = por %p55, %p56
      %p59 = scmp.ne.s32.totalorder %s42, %s58
      %p60 = scmp.eq.s32.totalorder %s20, 0
      %p61 = por %p59, %p60
      %s63 = sadd.s32 %s62, 1
      %p66 = scmp.eq.s32.totalorder %s14, 1
      %p67 = scmp.ne.s32.totalorder %s62, %s64
      %p68 = scmp.eq.s32.totalorder %s14, 0
      %p69 = por %p67, %p68
      %p70 = scmp.ne.s32.totalorder %s62, %s64
      %p71 = scmp.eq.s32.totalorder %s19, 1
      %p72 = por %p70, %p71
      %p73 = scmp.ne.s32.totalorder %s64, %s65
      %p74 = scmp.eq.s32.totalorder %s19, 0
      %p75 = por %p73, %p74
      %p76 = scmp.ne.s32.totalorder %s64, %s65
      %p77 = scmp.eq.s32.totalorder %s20, 1
      %p78 = por %p76, %p77
      %p80 = scmp.ne.s32.totalorder %s65, %s79
      %p81 = scmp.eq.s32.totalorder %s20, 0
      %p82 = por %p80, %p81
      %s84 = sadd.s32 %s83, 1
      %p87 = scmp.eq.s32.totalorder %s14, 1
      %p88 = scmp.ne.s32.totalorder %s83, %s85
      %p89 = scmp.eq.s32.totalorder %s14, 0
      %p90 = por %p88, %p89
      %p91 = scmp.ne.s32.totalorder %s83, %s85
      %p92 = scmp.eq.s32.totalorder %s19, 1
      %p93 = por %p91, %p92
      %p94 = scmp.ne.s32.totalorder %s85, %s86
      %p95 = scmp.eq.s32.totalorder %s19, 0
      %p96 = por %p94, %p95
      %p97 = scmp.ne.s32.totalorder %s85, %s86
      %p98 = scmp.eq.s32.totalorder %s20, 1
      %p99 = por %p97, %p98
      %p101 = scmp.ne.s32.totalorder %s86, %s100
      %p102 = scmp.eq.s32.totalorder %s20, 0
      %p103 = por %p101, %p102
      %s105 = sadd.s32 %s104, 1
      %p108 = scmp.eq.s32.totalorder %s14, 1
      %p109 = scmp.ne.s32.totalorder %s104, %s106
      %p110 = scmp.eq.s32.totalorder %s14, 0
      %p111 = por %p109, %p110
      %p112 = scmp.ne.s32.totalorder %s104, %s106
      %p113 = scmp.eq.s32.totalorder %s19, 1
      %p114 = por %p112, %p113
      %p115 = scmp.ne.s32.totalorder %s106, %s107
      %p116 = scmp.eq.s32.totalorder %s19, 0
      %p117 = por %p115, %p116
      %p118 = scmp.ne.s32.totalorder %s106, %s107
      %p119 = scmp.eq.s32.totalorder %s20, 1
      %p120 = por %p118, %p119
      %p122 = scmp.ne.s32.totalorder %s107, %s121
      %p123 = scmp.eq.s32.totalorder %s20, 0
      %p124 = por %p122, %p123
      %s126 = sadd.s32 %s125, 1
      %p129 = scmp.eq.s32.totalorder %s14, 1
      %p130 = scmp.ne.s32.totalorder %s125, %s127
      %p131 = scmp.eq.s32.totalorder %s14, 0
      %p132 = por %p130, %p131
      %p133 = scmp.ne.s32.totalorder %s125, %s127
      %p134 = scmp.eq.s32.totalorder %s19, 1
      %p135 = por %p133, %p134
      %p136 = scmp.ne.s32.totalorder %s127, %s128
      %p137 = scmp.eq.s32.totalorder %s19, 0
      %p138 = por %p136, %p137
      %p139 = scmp.ne.s32.totalorder %s127, %s128
      %p140 = scmp.eq.s32.totalorder %s20, 1
      %p141 = por %p139, %p140
      %p143 = scmp.ne.s32.totalorder %s128, %s142
      %p144 = scmp.eq.s32.totalorder %s20, 0
      %p145 = por %p143, %p144
      %s146 = ssub.s32 %s21, %s33
      %s147 = ssub.s32 %s22, %s29
      %s148 = sor.u32 %s146, %s147
      %p149 = scmp.eq.s32.totalorder %s148, 0
      %s151 = sadd.s32 %s150, 1
      %s152 = scalar_select %p149, %s150, %s151
      %p155 = pneg %p149
      %p156 = scmp.eq.s32.totalorder %s14, 1
      %p157 = por %p155, %p156
      %p158 = scmp.ne.s32.totalorder %s150, %s153
      %p159 = scmp.eq.s32.totalorder %s14, 0
      %p160 = por %p158, %p159
      %p161 = scmp.ne.s32.totalorder %s150, %s153
      %p162 = scmp.eq.s32.totalorder %s19, 1
      %p163 = por %p161, %p162
      %p164 = scmp.ne.s32.totalorder %s153, %s154
      %p165 = scmp.eq.s32.totalorder %s19, 0
      %p166 = por %p164, %p165
      %p167 = scmp.ne.s32.totalorder %s153, %s154
      %p168 = scmp.eq.s32.totalorder %s20, 1
      %p169 = por %p167, %p168
      %p171 = scmp.ne.s32.totalorder %s154, %s170
      %p172 = scmp.eq.s32.totalorder %s20, 0
      %p173 = por %p171, %p172
      %p174 = scmp.le.s32.totalorder 1, %s14
      %p175 = scmp.lt.s32.totalorder %s14, 3
      %p176 = pnand %p174, %p175
      %p177 = pneg %p176
      // Predicated region
      $region9: #{tpu_custom_call.1} parent=5 // pred_check
        _
      $region10: #{tpu_custom_call.1} parent=5 // pred_check_branch
        %179 = sbr.rel (%p176) target = $region12
      $region11: #{tpu_custom_call.1} parent=5 // pred_region
        %s180 = ssub.s32 %s14, 1
        // Predicated region
        $region13: #{tpu_custom_call.1} parent=11 // pred_check
          %p181 = pneg %p75
        $region14: #{tpu_custom_call.1} parent=11 // pred_check_branch
          %183 = sbr.rel (%p181) target = $region16
        $region15: #{tpu_custom_call.1} parent=11 // pred_region
          _
        $region16: #{tpu_custom_call.1} parent=11 // pred_fallthru
          _
        // Predicated region
        $region17: #{tpu_custom_call.1} parent=11 // pred_check
          %p184 = pneg %p96
        $region18: #{tpu_custom_call.1} parent=11 // pred_check_branch
          %186 = sbr.rel (%p184) target = $region20
        $region19: #{tpu_custom_call.1} parent=11 // pred_region
          _
        $region20: #{tpu_custom_call.1} parent=11 // pred_fallthru
          _
        // Predicated region
        $region21: #{tpu_custom_call.1} parent=11 // pred_check
          %p187 = pneg %p117
        $region22: #{tpu_custom_call.1} parent=11 // pred_check_branch
          %189 = sbr.rel (%p187) target = $region24
        $region23: #{tpu_custom_call.1} parent=11 // pred_region
          _
        $region24: #{tpu_custom_call.1} parent=11 // pred_fallthru
          _
        // Predicated region
        $region25: #{tpu_custom_call.1} parent=11 // pred_check
          %p190 = pneg %p138
        $region26: #{tpu_custom_call.1} parent=11 // pred_check_branch
          %192 = sbr.rel (%p190) target = $region28
        $region27: #{tpu_custom_call.1} parent=11 // pred_region
          _
        $region28: #{tpu_custom_call.1} parent=11 // pred_fallthru
          _
      $region12: #{tpu_custom_call.1} parent=5 // pred_fallthru
        _
      %p193 = scmp.lt.s32.totalorder %s14, 2
      // Predicated region
      $region29: #{tpu_custom_call.1} parent=5 // pred_check
        %p194 = pneg %p193
      $region30: #{tpu_custom_call.1} parent=5 // pred_check_branch
        %196 = sbr.rel (%p194) target = $region32
      $region31: #{tpu_custom_call.1} parent=5 // pred_region
        // Predicated region
        $region33: #{tpu_custom_call.1} parent=31 // pred_check
          %p197 = pneg %p48
        $region34: #{tpu_custom_call.1} parent=31 // pred_check_branch
          %199 = sbr.rel (%p197) target = $region36
        $region35: #{tpu_custom_call.1} parent=31 // pred_region
          %p200 = scmp.lt.s32.totalorder %s21, 1
          %s201 = scalar_select %p200, %s21, 1
          %p202 = scmp.lt.s32.totalorder %s22, 0
          %s203 = scalar_select %p202, %s22, 0
          %s204 = smul.addr %s203, 10
          %s205 = smul.addr %s201, 10
          %s206 = sadd.s32 %s204, %s205
          %s207 = smul.addr %s206, 4
          %s208 = scalar_lea.vmem %s0, %s207
        $region36: #{tpu_custom_call.1} parent=31 // pred_fallthru
          _
      $region32: #{tpu_custom_call.1} parent=5 // pred_fallthru
        _
      %p209 = scmp.le.s32.totalorder 1, %s14
      %p210 = scmp.lt.s32.totalorder %s14, 3
      %p211 = pnand %p209, %p210
      %p212 = pneg %p211
      // Predicated region
      $region37: #{tpu_custom_call.1} parent=5 // pred_check
        _
      $region38: #{tpu_custom_call.1} parent=5 // pred_check_branch
        %214 = sbr.rel (%p211) target = $region40
      $region39: #{tpu_custom_call.1} parent=5 // pred_region
        %s215 = ssub.s32 %s14, 1
        %p216 = scmp.lt.s32.totalorder %s23, 1
        %s217 = scalar_select %p216, %s23, 1
        %p218 = scmp.lt.s32.totalorder %s24, 0
        %s219 = scalar_select %p218, %s24, 0
        %s220 = smul.addr %s219, 10
        %s221 = smul.addr %s217, 10
        %s222 = sadd.s32 %s220, %s221
        %s223 = smul.addr %s222, 4
        %s224 = scalar_lea.vmem %s0, %s223
        %p225 = pneg %p54
        %p226 = pneg %p51
        %p227 = pneg %p75
        %p228 = pneg %p72
        %p229 = pneg %p96
        %p230 = pneg %p93
        %p231 = pneg %p117
        %p232 = pneg %p114
        %p233 = pneg %p138
        %p234 = pneg %p135
        %p235 = pneg %p166
        %p236 = pneg %p163
        %s237 = sand.u32 %s153, 1
        %s238 = scalar_lea.sflag [#allocation3], %s237
        %s239 = sand.u32 %s153, 1
        %s240 = smul.addr %s239, 64
        %s241 = scalar_lea.vmem [#allocation2], %s240
        %p242 = scmp.lt.s32.totalorder %s23, 1
        %s243 = scalar_select %p242, %s23, 1
        %p244 = scmp.lt.s32.totalorder %s24, 0
        %s245 = scalar_select %p244, %s24, 0
        %s246 = smul.addr %s245, 10
        %s247 = smul.addr %s243, 10
        %s248 = sadd.s32 %s246, %s247
        %s249 = smul.addr %s248, 4
        %s250 = scalar_lea.vmem %s0, %s249
        %v252 = vld [vmem:[%s250] sm:$0xf]
        %v253 = vld [vmem:[%s250 + $0x4] sm:$0xf]
        %v254 = vld [vmem:[%s250 + $0x8] sm:$0xf]
        %v255 = vld [vmem:[%s250 + $0xc] sm:$0xf]
        %v256 = vld [vmem:[%s250 + $0x10] sm:$0xf]
        %v257 = vld [vmem:[%s250 + $0x14] sm:$0xf]
        %v258 = vld [vmem:[%s250 + $0x18] sm:$0xf]
        %v259 = vld [vmem:[%s250 + $0x1c] sm:$0xf]
        %v260 = vld [vmem:[%s1] sm:$0xf]
        %v261 = vld [vmem:[%s1 + $0x4] sm:$0xf]
        %v262 = vld [vmem:[%s1 + $0x8] sm:$0xf]
        %v263 = vld [vmem:[%s1 + $0xc] sm:$0xf]
        %v264 = vld [vmem:[%s1 + $0x10] sm:$0xf]
        %v265 = vld [vmem:[%s1 + $0x14] sm:$0xf]
        %v266 = vld [vmem:[%s250 + $0x20] sm:$0xf]
        %s267 = scalar_lea.vmem %s1, 24
        %v268 = vld [vmem:[%s267] sm:$0xf]
        %v269 = vld [vmem:[%s267 + $0x4] sm:$0xf]
        %v270 = vld [vmem:[%s267 + $0x8] sm:$0xf]
        %v271 = vld [vmem:[%s267 + $0xc] sm:$0xf]
        %v272 = vld [vmem:[%s267 + $0x10] sm:$0xf]
        %v273 = vld [vmem:[%s267 + $0x14] sm:$0xf]
        %v282 = vunpack.c.l.b16 %v253
        %v283 = vunpack.c.l.b16 %v254
        %v284 = vunpack.c.l.b16 %v255
        %v285 = vunpack.c.l.b16 %v256
        %v286 = vunpack.c.l.b16 %v257
        %v287 = vunpack.c.l.b16 %v258
        %v288 = vunpack.c.l.b16 %v259
        %v289 = vunpack.c.l.b16 %v266
        %v290 = vpack.c.b16 %v283, %v282
        %v291 = vpack.c.b16 %v285, %v284
        %v292 = vpack.c.b16 %v287, %v286
        %v293 = vpack.c.b16 %v289, %v288
        %v300 = vunpack.c.l.b16 %v268
        %v301 = vunpack.c.l.b16 %v269
        %v302 = vunpack.c.l.b16 %v270
        %v303 = vunpack.c.l.b16 %v271
        %v304 = vunpack.c.l.b16 %v272
        %v305 = vunpack.c.l.b16 %v273
        %v306 = vpack.c.b16 %v301, %v300
        %v307 = vpack.c.b16 %v303, %v302
        %v308 = vpack.c.b16 %v305, %v304
        %vm312 = vcmask 392192
        %v314 = vsel %vm312, %v290, 0
        %v317 = vsel %vm312, %v291, 0
        %v320 = vsel %vm312, %v292, 0
        %v323 = vsel %vm312, %v293, 0
        %325 = vmatpush.bf16.msra.mxu0 0
        %326 = vmatpush.bf16.msra.mxu0 0
        %327 = vmatpush.bf16.msra.mxu0 0
        %328 = vmatpush.bf16.msra.mxu0 0
        %329 = vmatpush.bf16.msra.mxu0 0
        %330 = vmatpush.bf16.msra.mxu0 %v308
        %331 = vmatpush.bf16.msra.mxu0 %v307
        %332 = vmatpush.bf16.msra.mxu0 %v306
        %333 = vmatmul.bf16.gmra.mxu0 %v314
        %v334 = vpop.f32.mrf.mxu0
        %v335 = vadd.f32 0.0, %v334
        %v336 = vpop.f32.mrf.mxu0
        %v337 = vadd.f32 0.0, %v336
        %338 = vmatmul.bf16.gmra.mxu0 %v317
        %v339 = vpop.f32.mrf.mxu0
        %v340 = vadd.f32 0.0, %v339
        %v341 = vpop.f32.mrf.mxu0
        %v342 = vadd.f32 0.0, %v341
        %343 = vmatmul.bf16.gmra.mxu0 %v320
        %v344 = vpop.f32.mrf.mxu0
        %v345 = vadd.f32 0.0, %v344
        %v346 = vpop.f32.mrf.mxu0
        %v347 = vadd.f32 0.0, %v346
        %348 = vmatmul.bf16.gmra.mxu0 %v323
        %v349 = vpop.f32.mrf.mxu0
        %v350 = vadd.f32 0.0, %v349
        %v351 = vpop.f32.mrf.mxu0
        %v352 = vadd.f32 0.0, %v351
        %353 = vdwg.mxu0
        %v355 = vunpack.c.l.b16 %v252
        %v356 = vpack.c.b16 %v282, %v355
        %v357 = vpack.c.b16 %v284, %v283
        %v358 = vpack.c.b16 %v286, %v285
        %v359 = vpack.c.b16 %v288, %v287
        %v366 = vunpack.c.l.b16 %v260
        %v367 = vunpack.c.l.b16 %v261
        %v368 = vunpack.c.l.b16 %v262
        %v369 = vunpack.c.l.b16 %v263
        %v370 = vunpack.c.l.b16 %v264
        %v371 = vunpack.c.l.b16 %v265
        %v372 = vpack.c.b16 %v367, %v366
        %v373 = vpack.c.b16 %v369, %v368
        %v374 = vpack.c.b16 %v371, %v370
        %v379 = vsel %vm312, %v356, 0
        %v382 = vsel %vm312, %v357, 0
        %v385 = vsel %vm312, %v358, 0
        %v388 = vsel %vm312, %v359, 0
        %390 = vmatpush.bf16.msra.mxu0 0
        %391 = vmatpush.bf16.msra.mxu0 0
        %392 = vmatpush.bf16.msra.mxu0 0
        %393 = vmatpush.bf16.msra.mxu0 0
        %394 = vmatpush.bf16.msra.mxu0 0
        %395 = vmatpush.bf16.msra.mxu0 %v374
        %396 = vmatpush.bf16.msra.mxu0 %v373
        %397 = vmatpush.bf16.msra.mxu0 %v372
        %398 = vmatmul.bf16.gmra.mxu0 %v379
        %v399 = vpop.f32.mrf.mxu0
        %v400 = vadd.f32 %v335, %v399
        %v401 = vpop.f32.mrf.mxu0
        %v402 = vadd.f32 %v337, %v401
        %403 = vmatmul.bf16.gmra.mxu0 %v382
        %v404 = vpop.f32.mrf.mxu0
        %v405 = vadd.f32 %v340, %v404
        %v406 = vpop.f32.mrf.mxu0
        %v407 = vadd.f32 %v342, %v406
        %408 = vmatmul.bf16.gmra.mxu0 %v385
        %v409 = vpop.f32.mrf.mxu0
        %v410 = vadd.f32 %v345, %v409
        %v411 = vpop.f32.mrf.mxu0
        %v412 = vadd.f32 %v347, %v411
        %413 = vmatmul.bf16.gmra.mxu0 %v388
        %v414 = vpop.f32.mrf.mxu0
        %v415 = vadd.f32 %v350, %v414
        %v416 = vpop.f32.mrf.mxu0
        %v417 = vadd.f32 %v352, %v416
        %418 = vdwg.mxu0
        %v419 = vld [vmem:[%s250 + $0x8] sm:$0xf]
        %v420 = vld [vmem:[%s250 + $0xc] sm:$0xf]
        %v421 = vld [vmem:[%s250 + $0x10] sm:$0xf]
        %v422 = vld [vmem:[%s250 + $0x14] sm:$0xf]
        %v423 = vld [vmem:[%s250 + $0x18] sm:$0xf]
        %v424 = vld [vmem:[%s250 + $0x1c] sm:$0xf]
        %v425 = vld [vmem:[%s250 + $0x20] sm:$0xf]
        %v426 = vld [vmem:[%s250 + $0x24] sm:$0xf]
        %s427 = scalar_lea.vmem %s1, 48
        %v428 = vld [vmem:[%s427] sm:$0xf]
        %v429 = vld [vmem:[%s427 + $0x4] sm:$0xf]
        %v430 = vld [vmem:[%s427 + $0x8] sm:$0xf]
        %v431 = vld [vmem:[%s427 + $0xc] sm:$0xf]
        %v432 = vld [vmem:[%s427 + $0x10] sm:$0xf]
        %v433 = vld [vmem:[%s427 + $0x14] sm:$0xf]
        %v442 = vunpack.c.l.b16 %v419
        %v443 = vunpack.c.l.b16 %v420
        %v444 = vunpack.c.l.b16 %v421
        %v445 = vunpack.c.l.b16 %v422
        %v446 = vunpack.c.l.b16 %v423
        %v447 = vunpack.c.l.b16 %v424
        %v448 = vunpack.c.l.b16 %v425
        %v449 = vunpack.c.l.b16 %v426
        %v450 = vpack.c.b16 %v443, %v442
        %v451 = vpack.c.b16 %v445, %v444
        %v452 = vpack.c.b16 %v447, %v446
        %v453 = vpack.c.b16 %v449, %v448
        %v460 = vunpack.c.l.b16 %v428
        %v461 = vunpack.c.l.b16 %v429
        %v462 = vunpack.c.l.b16 %v430
        %v463 = vunpack.c.l.b16 %v431
        %v464 = vunpack.c.l.b16 %v432
        %v465 = vunpack.c.l.b16 %v433
        %v466 = vpack.c.b16 %v461, %v460
        %v467 = vpack.c.b16 %v463, %v462
        %v468 = vpack.c.b16 %v465, %v464
        %v473 = vsel %vm312, %v450, 0
        %v476 = vsel %vm312, %v451, 0
        %v479 = vsel %vm312, %v452, 0
        %v482 = vsel %vm312, %v453, 0
        %484 = vmatpush.bf16.msra.mxu0 0
        %485 = vmatpush.bf16.msra.mxu0 0
        %486 = vmatpush.bf16.msra.mxu0 0
        %487 = vmatpush.bf16.msra.mxu0 0
        %488 = vmatpush.bf16.msra.mxu0 0
        %489 = vmatpush.bf16.msra.mxu0 %v468
        %490 = vmatpush.bf16.msra.mxu0 %v467
        %491 = vmatpush.bf16.msra.mxu0 %v466
        %492 = vmatmul.bf16.gmra.mxu0 %v473
        %v493 = vpop.f32.mrf.mxu0
        %v494 = vadd.f32 0.0, %v493
        %v495 = vpop.f32.mrf.mxu0
        %v496 = vadd.f32 0.0, %v495
        %497 = vmatmul.bf16.gmra.mxu0 %v476
        %v498 = vpop.f32.mrf.mxu0
        %v499 = vadd.f32 0.0, %v498
        %v500 = vpop.f32.mrf.mxu0
        %v501 = vadd.f32 0.0, %v500
        %502 = vmatmul.bf16.gmra.mxu0 %v479
        %v503 = vpop.f32.mrf.mxu0
        %v504 = vadd.f32 0.0, %v503
        %v505 = vpop.f32.mrf.mxu0
        %v506 = vadd.f32 0.0, %v505
        %507 = vmatmul.bf16.gmra.mxu0 %v482
        %v508 = vpop.f32.mrf.mxu0
        %v509 = vadd.f32 0.0, %v508
        %v510 = vpop.f32.mrf.mxu0
        %v511 = vadd.f32 0.0, %v510
        %512 = vdwg.mxu0
        %v513 = vadd.f32 %v400, %v494
        %v514 = vadd.f32 %v402, %v496
        %v515 = vadd.f32 %v405, %v499
        %v516 = vadd.f32 %v407, %v501
        %v517 = vadd.f32 %v410, %v504
        %v518 = vadd.f32 %v412, %v506
        %v519 = vadd.f32 %v415, %v509
        %v520 = vadd.f32 %v417, %v511
        %v521 = vld [vmem:[%s2] sm:$0x1]
        %v523 = vperm.slane %v521, 0
        %v525 = vadd.f32 %v513, %v523
        %v526 = vadd.f32 %v514, %v523
        %v527 = vadd.f32 %v515, %v523
        %v528 = vadd.f32 %v516, %v523
        %v529 = vadd.f32 %v517, %v523
        %v530 = vadd.f32 %v518, %v523
        %v531 = vadd.f32 %v519, %v523
        %v532 = vadd.f32 %v520, %v523
        %v533 = vmax.f32 %v525, 0.0
        %v534 = vmax.f32 %v526, 0.0
        %v535 = vmax.f32 %v527, 0.0
        %v536 = vmax.f32 %v528, 0.0
        %v537 = vmax.f32 %v529, 0.0
        %v538 = vmax.f32 %v530, 0.0
        %v539 = vmax.f32 %v531, 0.0
        %v540 = vmax.f32 %v532, 0.0
        %v541 = vpack.c.bf16 %v534, %v533
        %v542 = vpack.c.bf16 %v536, %v535
        %v543 = vpack.c.bf16 %v538, %v537
        %v544 = vpack.c.bf16 %v540, %v539
        %v545 = vld [vmem:[%s3] sm:$0xf]
        %v546 = vld [vmem:[%s3 + $0x4] sm:$0xf]
        %v547 = vld [vmem:[%s3 + $0x8] sm:$0xf]
        %v548 = vld [vmem:[%s3 + $0xc] sm:$0xf]
        %v549 = vld [vmem:[%s4] sm:$0x1]
        %v551 = vperm.slane %v549, 0
        %v557 = vunpack.c.l.b16 %v545
        %v558 = vunpack.c.l.b16 %v546
        %v559 = vunpack.c.l.b16 %v547
        %v560 = vunpack.c.l.b16 %v548
        %v561 = vpack.c.b16 %v558, %v557
        %v562 = vpack.c.b16 %v560, %v559
        %vm565 = vcmask 261120
        %v567 = vsel %vm565, %v541, 0
        %v570 = vsel %vm565, %v542, 0
        %v573 = vsel %vm565, %v543, 0
        %v576 = vsel %vm565, %v544, 0
        %578 = vmatpush.bf16.msra.mxu0 0
        %579 = vmatpush.bf16.msra.mxu0 0
        %580 = vmatpush.bf16.msra.mxu0 0
        %581 = vmatpush.bf16.msra.mxu0 0
        %582 = vmatpush.bf16.msra.mxu0 0
        %583 = vmatpush.bf16.msra.mxu0 0
        %584 = vmatpush.bf16.msra.mxu0 %v562
        %585 = vmatpush.bf16.msra.mxu0 %v561
        %586 = vmatmul.bf16.gmra.mxu0 %v567
        %v587 = vpop.f32.mrf.mxu0
        %v588 = vadd.f32 %v551, %v587
        %v589 = vpop.f32.mrf.mxu0
        %v590 = vadd.f32 %v551, %v589
        %591 = vmatmul.bf16.gmra.mxu0 %v570
        %v592 = vpop.f32.mrf.mxu0
        %v593 = vadd.f32 %v551, %v592
        %v594 = vpop.f32.mrf.mxu0
        %v595 = vadd.f32 %v551, %v594
        %596 = vmatmul.bf16.gmra.mxu0 %v573
        %v597 = vpop.f32.mrf.mxu0
        %v598 = vadd.f32 %v551, %v597
        %v599 = vpop.f32.mrf.mxu0
        %v600 = vadd.f32 %v551, %v599
        %601 = vmatmul.bf16.gmra.mxu0 %v576
        %v602 = vpop.f32.mrf.mxu0
        %v603 = vadd.f32 %v551, %v602
        %v604 = vpop.f32.mrf.mxu0
        %v605 = vadd.f32 %v551, %v604
        %606 = vdwg.mxu0
        %v607 = vlaneseq
        %v608 = vand.u32 %v607, 127
        %v609 = vsub.f32 0.0, %v588
        %v610 = vsub.f32 0.0, %v590
        %v611 = vsub.f32 0.0, %v593
        %v612 = vsub.f32 0.0, %v595
        %v613 = vsub.f32 0.0, %v598
        %v614 = vsub.f32 0.0, %v600
        %v615 = vsub.f32 0.0, %v603
        %v616 = vsub.f32 0.0, %v605
        %v617 = vmul.f32 %v609, 1.442695
        %v618 = vpow.pop %v617
        %v619 = vmul.f32 %v610, 1.442695
        %v620 = vpow.pop %v619
        %v621 = vmul.f32 %v611, 1.442695
        %v622 = vpow.pop %v621
        %v623 = vmul.f32 %v612, 1.442695
        %v624 = vpow.pop %v623
        %v625 = vmul.f32 %v613, 1.442695
        %v626 = vpow.pop %v625
        %v627 = vmul.f32 %v614, 1.442695
        %v628 = vpow.pop %v627
        %v629 = vmul.f32 %v615, 1.442695
        %v630 = vpow.pop %v629
        %v631 = vmul.f32 %v616, 1.442695
        %v632 = vpow.pop %v631
        %v633 = vadd.f32 %v618, 1.0
        %v634 = vadd.f32 %v620, 1.0
        %v635 = vadd.f32 %v622, 1.0
        %v636 = vadd.f32 %v624, 1.0
        %v637 = vadd.f32 %v626, 1.0
        %v638 = vadd.f32 %v628, 1.0
        %v639 = vadd.f32 %v630, 1.0
        %v640 = vadd.f32 %v632, 1.0
        %v641 = vrcp.pop %v633
        %v642 = vrcp.pop %v634
        %v643 = vrcp.pop %v635
        %v644 = vrcp.pop %v636
        %v645 = vrcp.pop %v637
        %v646 = vrcp.pop %v638
        %v647 = vrcp.pop %v639
        %v648 = vrcp.pop %v640
        %vm649 = vcmp.ge.s32.totalorder %v608, 54
        %vm650 = vcmp.lt.s32.totalorder %v608, 63
        %vm651 = vmand %vm649, %vm650
        %v652 = vsel %vm651, %v641, %v588
        %v653 = vsel %vm651, %v642, %v590
        %v654 = vsel %vm651, %v643, %v593
        %v655 = vsel %vm651, %v644, %v595
        %v656 = vsel %vm651, %v645, %v598
        %v657 = vsel %vm651, %v646, %v600
        %v658 = vsel %vm651, %v647, %v603
        %v659 = vsel %vm651, %v648, %v605
        %660 = vst [vmem:[%s241] sm:$0xff] %v652
        %661 = vst [vmem:[%s241 + $0x8] sm:$0xff] %v653
        %662 = vst [vmem:[%s241 + $0x10] sm:$0xff] %v654
        %663 = vst [vmem:[%s241 + $0x18] sm:$0xff] %v655
        %664 = vst [vmem:[%s241 + $0x20] sm:$0xff] %v656
        %665 = vst [vmem:[%s241 + $0x28] sm:$0xff] %v657
        %666 = vst [vmem:[%s241 + $0x30] sm:$0xff] %v658
        %667 = vst [vmem:[%s241 + $0x38] sm:$0xff] %v659
        %s668 = sand.u32 %s153, 1
        %s669 = scalar_lea.sflag [#allocation3], %s668
        %s670 = sand.u32 %s153, 1
        %s671 = smul.addr %s670, 64
        %s672 = scalar_lea.vmem [#allocation2], %s671
        // Predicated region
        $region41: #{tpu_custom_call.1} parent=39 // pred_check
          %p673 = pneg %p163
        $region42: #{tpu_custom_call.1} parent=39 // pred_check_branch
          %675 = sbr.rel (%p673) target = $region44
        $region43: #{tpu_custom_call.1} parent=39 // pred_region
          %677 = vsyncadd %s669, 0
          %s678 = smul.addr %s24, 8
          %s679 = smul.addr %s23, 8
          %s680 = sadd.s32 %s678, %s679
          %s681 = smul.addr %s680, 8
          %s682 = scalar_lea.hbm %s5, %s681
          %s683 = sshll.u32 %s672, 4
          %s684 = int_to_ptr.vmem [resolvable:$true] %s683
          %s685 = sshll.u32 %s682, 4
          %s686 = int_to_ptr.hbm [resolvable:$true] %s685
          %691 = dma.vmem_to_hbm [thread:$0]  %s684, 1024, %s686, %s669, 128, 128, 8
        $region44: #{tpu_custom_call.1} parent=39 // pred_fallthru
          _
      $region40: #{tpu_custom_call.1} parent=5 // pred_fallthru
        _
      %p692 = scmp.le.s32.totalorder 2, %s14
      // Predicated region
      $region45: #{tpu_custom_call.1} parent=5 // pred_check
        %p693 = pneg %p692
      $region46: #{tpu_custom_call.1} parent=5 // pred_check_branch
        %695 = sbr.rel (%p693) target = $region48
      $region47: #{tpu_custom_call.1} parent=5 // pred_region
        %s696 = ssub.s32 %s14, 2
        // Predicated region
        $region49: #{tpu_custom_call.1} parent=47 // pred_check
          %p697 = pneg %p169
        $region50: #{tpu_custom_call.1} parent=47 // pred_check_branch
          %699 = sbr.rel (%p697) target = $region52
        $region51: #{tpu_custom_call.1} parent=47 // pred_region
          %s700 = sand.u32 %s154, 1
          %s701 = scalar_lea.sflag [#allocation3], %s700
          %s702 = sand.u32 %s154, 1
          %s703 = smul.addr %s702, 64
          %s704 = scalar_lea.vmem [#allocation2], %s703
          %706 = dma.done %s701, 1024
        $region52: #{tpu_custom_call.1} parent=47 // pred_fallthru
          _
      $region48: #{tpu_custom_call.1} parent=5 // pred_fallthru
        _
    $region6: #{tpu_custom_call.1} parent=1 // loop_footer
      %s18 = sadd.s32 1, %s14
    $region7: #{tpu_custom_call.1} parent=1 // loop_footer_branch
      %13 = sbr.rel target = $region3
    $region8: #{tpu_custom_call.1} parent=1 // loop_exit
      _
    %707 = vsyncpa [#allocation3], 1
    %s708 = scalar_lea.sflag [#allocation3], 1
    %709 = vsyncpa %s708, 1

</llo_original>
